<compile_context>
chip_gen: v7x
topology: tpu7x:2x2x1
jax: 0.10.0
libtpu: 0.0.40
codegen_flags: <defaults>
</compile_context>

<pallas_src>
import functools  # noqa: F401  (kept for easy re-introduction of static kernel params)

import jax
import jax.numpy as jnp
from jax.experimental import pallas as pl
from jax.experimental.pallas import tpu as pltpu

EPS = 1e-5                       # nn.BatchNorm3d default eps
TILE_P = 8192                    # output positions (lanes) per grid step
VMEM_LIMIT = 48 * 1024 * 1024    # <= v7x 64 MiB physical; fine on v5e/v6e (128 MiB)

# MXU operand dtype.  bf16 halves the dominant HBM stream and is MXU-native on all
# generations; accumulation (preferred_element_type) and all BN/elementwise math are f32.
MXU_DTYPE = jnp.bfloat16


def _round_up(x, m):
    return (x + m - 1) // m * m


def _conv_stats_kernel(w_ref, x_ref, o_ref, psum_ref, psq_ref):
    """One P-tile: conv = W @ X_tile (single wide-K MXU matmul, f32 accumulate),
    plus per-tile BatchNorm partial sums over the lane (P) axis."""
    acc = jnp.dot(w_ref[...], x_ref[...],
                  preferred_element_type=jnp.float32)          # (cout_p, tp) f32
    o_ref[...] = acc
    # Zero-padded P columns contribute exactly 0 (no conv bias), so no masking needed.
    cout_p = acc.shape[0]
    psum_ref[...] = jnp.sum(acc, axis=1, keepdims=True).reshape(1, cout_p, 1)
    psq_ref[...] = jnp.sum(acc * acc, axis=1, keepdims=True).reshape(1, cout_p, 1)


def _bn_relu_kernel(conv_ref, scale_ref, shift_ref, o_ref):
    """Streaming, lane-dense normalize + ReLU: y = max(scale*x + shift, 0), all f32."""
    o_ref[...] = jnp.maximum(conv_ref[...] * scale_ref[...] + shift_ref[...], 0.0)


@jax.jit
def single_conv_block(x, w, conv_bias, gamma, beta):
    """Conv3d(k=3, stride=2, pad=1) + BatchNorm3d (batch stats) + ReLU.

    x: (N, Cin, D, H, W);  w: (Cout, Cin, 3, 3, 3) (PyTorch Conv3d layout).
    Returns (N, Cout, D', H', W') with D' = (D-1)//2 + 1, etc.

    conv_bias is accepted (module has one) but intentionally unused: a conv bias
    followed by training-mode BatchNorm cancels exactly, so the output is identical.
    """
    del conv_bias
    n, c_in, d, h, wdim = x.shape
    c_out = w.shape[0]
    do = (d - 1) // 2 + 1
    ho = (h - 1) // 2 + 1
    wo = (wdim - 1) // 2 + 1
    p = n * do * ho * wo
    k = 27 * c_in
    kp = _round_up(k, 128)               # contraction dim (sublanes of xcol)
    cout_p = _round_up(c_out, 16)        # sublane pad only (16 covers f32 & bf16 tiles)
    tp = TILE_P if p >= TILE_P else _round_up(p, 128)   # lane dim: multiple of 128
    p_pad = _round_up(p, tp)
    n_tiles = p_pad // tp

    # ---- glue: channel-major im2col, built directly in bf16 -> (kp, p_pad) slab ----
    # TODO(synk): fold im2col into the Pallas kernel (stream the padded NDHWC input with
    # memory_space=pl.ANY and assemble the (kp, tp) operand in VMEM) to cut the ~27x
    # input-slab HBM traffic; for now only the slab dtype is narrowed.
    xc = jnp.transpose(x, (1, 0, 2, 3, 4)).astype(MXU_DTYPE)   # (Cin, N, D, H, W)
    xpad = jnp.pad(xc, ((0, 0), (0, 0), (1, 1), (1, 1), (1, 1)))
    cols = []
    for kd in range(3):
        for kh in range(3):
            for kw in range(3):
                cols.append(xpad[:, :,
                                 kd:kd + 2 * do - 1:2,
                                 kh:kh + 2 * ho - 1:2,
                                 kw:kw + 2 * wo - 1:2])
    xcol = jnp.stack(cols, axis=0).reshape(k, p)               # rows: tap-major, cin-minor
    xcol = jnp.pad(xcol, ((0, kp - k), (0, p_pad - p)))        # (kp, p_pad) bf16

    wmat = jnp.transpose(w, (0, 2, 3, 4, 1)).reshape(c_out, k).astype(jnp.float32)
    wmat = jnp.pad(wmat, ((0, cout_p - c_out), (0, kp - k))).astype(MXU_DTYPE)

    gamma_p = jnp.pad(gamma.astype(jnp.float32), (0, cout_p - c_out))
    beta_p = jnp.pad(beta.astype(jnp.float32), (0, cout_p - c_out))

    itemsize = jnp.dtype(MXU_DTYPE).itemsize

    # ---- pass 1: tiled GEMM (conv) with per-tile BN partial stats ----
    conv, psum, psq = pl.pallas_call(
        _conv_stats_kernel,
        out_shape=(jax.ShapeDtypeStruct((cout_p, p_pad), jnp.float32),
                   jax.ShapeDtypeStruct((n_tiles, cout_p, 1), jnp.float32),
                   jax.ShapeDtypeStruct((n_tiles, cout_p, 1), jnp.float32)),
        grid_spec=pltpu.PrefetchScalarGridSpec(
            num_scalar_prefetch=0,
            grid=(n_tiles,),
            in_specs=[
                pl.BlockSpec((cout_p, kp), lambda i: (0, 0)),     # weights, VMEM-resident
                pl.BlockSpec((kp, tp), lambda i: (0, i)),         # streamed im2col tiles
            ],
            out_specs=[
                pl.BlockSpec((cout_p, tp), lambda i: (0, i)),     # conv tiles (narrow rows)
                pl.BlockSpec((1, cout_p, 1), lambda i: (i, 0, 0)),  # per-tile sum
                pl.BlockSpec((1, cout_p, 1), lambda i: (i, 0, 0)),  # per-tile sum of squares
            ]),
        compiler_params=pltpu.CompilerParams(
            dimension_semantics=("parallel",),                    # megacore-shardable (v7x)
            vmem_limit_bytes=VMEM_LIMIT),
        cost_estimate=pl.CostEstimate(
            flops=2 * p_pad * kp * cout_p,
            transcendentals=0,
            bytes_accessed=(kp * p_pad + cout_p * kp) * itemsize + cout_p * p_pad * 4),
    )(wmat, xcol)

    # ---- BN statistics from per-tile partials (tiny (n_tiles, cout_p) reduction) ----
    count = jnp.float32(p)
    mean = jnp.sum(psum[:, :, 0], axis=0) / count
    # TODO(synk): E[x^2]-E[x]^2 in f32 is cancellation-prone for very large P / large
    # |mean|; a per-tile centered sum-of-squares with Chan-style merging would fix it
    # without an extra streaming pass.
    var = jnp.maximum(jnp.sum(psq[:, :, 0], axis=0) / count - mean * mean, 0.0)
    inv_std = jax.lax.rsqrt(var + EPS)
    scale = (gamma_p * inv_std).reshape(cout_p, 1)
    shift = (beta_p - mean * gamma_p * inv_std).reshape(cout_p, 1)

    # ---- pass 2: streaming lane-dense scale*x + shift + ReLU (conv aliased to y) ----
    y = pl.pallas_call(
        _bn_relu_kernel,
        out_shape=jax.ShapeDtypeStruct((cout_p, p_pad), jnp.float32),
        grid_spec=pltpu.PrefetchScalarGridSpec(
            num_scalar_prefetch=0,
            grid=(n_tiles,),
            in_specs=[
                pl.BlockSpec((cout_p, tp), lambda i: (0, i)),
                pl.BlockSpec((cout_p, 1), lambda i: (0, 0)),
                pl.BlockSpec((cout_p, 1), lambda i: (0, 0)),
            ],
            out_specs=pl.BlockSpec((cout_p, tp), lambda i: (0, i))),
        compiler_params=pltpu.CompilerParams(
            dimension_semantics=("parallel",),
            vmem_limit_bytes=VMEM_LIMIT),
        input_output_aliases={0: 0},          # reuse the conv slab as the output buffer
        cost_estimate=pl.CostEstimate(
            flops=2 * p_pad * cout_p, transcendentals=0,
            bytes_accessed=2 * cout_p * p_pad * 4),
    )(conv, scale, shift)

    # TODO(synk): BatchNorm running_mean/running_var in-place update is a training-time
    # side effect that does not affect the returned tensor; not materialized here.

    # ---- glue: drop padding, back to NCDHW ----
    y = y[:c_out, :p].reshape(c_out, n, do, ho, wo)
    return jnp.transpose(y, (1, 0, 2, 3, 4))


def reference(x, w, conv_bias, gamma, beta):
    """Pure-JAX f32 reference: Conv3d(k=3,s=2,p=1) + training-mode BN + ReLU (NCDHW)."""
    c_out = w.shape[0]
    conv = jax.lax.conv_general_dilated(
        x, w, window_strides=(2, 2, 2),
        padding=((1, 1), (1, 1), (1, 1)),
        dimension_numbers=("NCDHW", "OIDHW", "NCDHW"),
        precision=jax.lax.Precision.HIGHEST)
    conv = conv + conv_bias.reshape(1, c_out, 1, 1, 1)
    mean = conv.mean(axis=(0, 2, 3, 4), keepdims=True)
    var = conv.var(axis=(0, 2, 3, 4), keepdims=True)   # biased, like PyTorch BN training
    norm = (conv - mean) * jax.lax.rsqrt(var + EPS)
    return jnp.maximum(
        norm * gamma.reshape(1, c_out, 1, 1, 1) + beta.reshape(1, c_out, 1, 1, 1), 0.0)


if __name__ == "__main__":
    N, Cin, Cout, D, H, W = 2, 4, 8, 16, 16, 16
    key = jax.random.PRNGKey(0)
    kx, kw, kb, kg, kbe = jax.random.split(key, 5)
    x = jax.random.normal(kx, (N, Cin, D, H, W), jnp.float32)
    w = jax.random.normal(kw, (Cout, Cin, 3, 3, 3), jnp.float32) * 0.1
    conv_bias = jax.random.normal(kb, (Cout,), jnp.float32) * 0.1
    gamma = 1.0 + 0.1 * jax.random.normal(kg, (Cout,), jnp.float32)
    beta = 0.1 * jax.random.normal(kbe, (Cout,), jnp.float32)

    y = single_conv_block(x, w, conv_bias, gamma, beta)
    y = jax.block_until_ready(y)
    assert y.shape == (N, Cout, D // 2, H // 2, W // 2), y.shape

    y_ref = reference(x, w, conv_bias, gamma, beta)
    max_err = jnp.max(jnp.abs(y - y_ref))
    # Tolerance loosened vs the f32 version: MXU operands are bf16 (accumulation f32).
    if not jnp.allclose(y, y_ref, atol=3e-2, rtol=3e-2):
        raise AssertionError(f"mismatch vs reference, max abs err = {max_err}")
    print("KERNEL_OK")
</pallas_src>

<mosaic_0001>
module attributes {stable_mosaic.version = 11 : i64} {
  func.func @_bn_relu_kernel(%arg0: i32, %arg1: memref<16x1024xf32, #tpu.memory_space<vmem>>, %arg2: memref<16x1xf32, #tpu.memory_space<vmem>>, %arg3: memref<16x1xf32, #tpu.memory_space<vmem>>, %arg4: memref<16x1024xf32, #tpu.memory_space<vmem>>) attributes {dimension_semantics = [#tpu.dimension_semantics<parallel>], iteration_bounds = array<i64: 1>, scalar_prefetch = 0 : i64, scratch_operands = 0 : i64, tpu.core_type = #tpu.core_type<tc>, window_params = [{transform_indices = @transform_0, window_bounds = array<i64: 16, 1024>}, {pipeline_mode = #tpu.pipeline_mode<synchronous>, transform_indices = @transform_1, window_bounds = array<i64: 16, 1>}, {pipeline_mode = #tpu.pipeline_mode<synchronous>, transform_indices = @transform_2, window_bounds = array<i64: 16, 1>}, {transform_indices = @transform_3, window_bounds = array<i64: 16, 1024>}]} {
    %c0 = arith.constant 0 : index
    %c0_0 = arith.constant 0 : index
    %0 = vector.load %arg1[%c0, %c0_0] : memref<16x1024xf32, #tpu.memory_space<vmem>>, vector<16x1024xf32>
    %c0_1 = arith.constant 0 : index
    %c0_2 = arith.constant 0 : index
    %1 = vector.load %arg2[%c0_1, %c0_2] : memref<16x1xf32, #tpu.memory_space<vmem>>, vector<16x1xf32>
    %2 = vector.broadcast %1 : vector<16x1xf32> to vector<16x1024xf32>
    %3 = arith.mulf %0, %2 : vector<16x1024xf32>
    %c0_3 = arith.constant 0 : index
    %c0_4 = arith.constant 0 : index
    %4 = vector.load %arg3[%c0_3, %c0_4] : memref<16x1xf32, #tpu.memory_space<vmem>>, vector<16x1xf32>
    %5 = vector.broadcast %4 : vector<16x1xf32> to vector<16x1024xf32>
    %6 = arith.addf %3, %5 : vector<16x1024xf32>
    %cst = arith.constant 0.000000e+00 : f32
    %7 = vector.broadcast %cst : f32 to vector<16x1024xf32>
    %8 = arith.maximumf %6, %7 : vector<16x1024xf32>
    %c0_5 = arith.constant 0 : index
    %c0_6 = arith.constant 0 : index
    %9 = vector.load %arg4[%c0_5, %c0_6] : memref<16x1024xf32, #tpu.memory_space<vmem>>, vector<16x1024xf32>
    tpu.vector_store %arg4[%c0_5, %c0_6], %8 {strides = array<i32>} : memref<16x1024xf32, #tpu.memory_space<vmem>>, vector<16x1024xf32>,
    return
  }
  func.func @transform_0(%arg0: i32) -> (i32, i32) {
    %c0_i32 = arith.constant 0 : i32
    %c0_i32_0 = arith.constant 0 : i32
    return %c0_i32, %arg0 : i32, i32
  }
  func.func @transform_1(%arg0: i32) -> (i32, i32) {
    %c0_i32 = arith.constant 0 : i32
    %c0_i32_0 = arith.constant 0 : i32
    %c0_i32_1 = arith.constant 0 : i32
    return %c0_i32, %c0_i32_0 : i32, i32
  }
  func.func @transform_2(%arg0: i32) -> (i32, i32) {
    %c0_i32 = arith.constant 0 : i32
    %c0_i32_0 = arith.constant 0 : i32
    %c0_i32_1 = arith.constant 0 : i32
    return %c0_i32, %c0_i32_0 : i32, i32
  }
  func.func @transform_3(%arg0: i32) -> (i32, i32) {
    %c0_i32 = arith.constant 0 : i32
    %c0_i32_0 = arith.constant 0 : i32
    return %c0_i32, %arg0 : i32, i32
  }
}

module attributes {stable_mosaic.version = 11 : i64} {
  func.func @_conv_stats_kernel(%arg0: i32, %arg1: memref<16x128xbf16, #tpu.memory_space<vmem>>, %arg2: memref<128x1024xbf16, #tpu.memory_space<vmem>>, %arg3: memref<16x1024xf32, #tpu.memory_space<vmem>>, %arg4: memref<1x16x1xf32, #tpu.memory_space<vmem>>, %arg5: memref<1x16x1xf32, #tpu.memory_space<vmem>>) attributes {dimension_semantics = [#tpu.dimension_semantics<parallel>], iteration_bounds = array<i64: 1>, scalar_prefetch = 0 : i64, scratch_operands = 0 : i64, tpu.core_type = #tpu.core_type<tc>, window_params = [{pipeline_mode = #tpu.pipeline_mode<synchronous>, transform_indices = @transform_0, window_bounds = array<i64: 16, 128>}, {transform_indices = @transform_1, window_bounds = array<i64: 128, 1024>}, {transform_indices = @transform_2, window_bounds = array<i64: 16, 1024>}, {transform_indices = @transform_3, window_bounds = array<i64: 1, 16, 1>}, {transform_indices = @transform_4, window_bounds = array<i64: 1, 16, 1>}]} {
    %c0 = arith.constant 0 : index
    %c0_0 = arith.constant 0 : index
    %0 = vector.load %arg1[%c0, %c0_0] : memref<16x128xbf16, #tpu.memory_space<vmem>>, vector<16x128xbf16>
    %c0_1 = arith.constant 0 : index
    %c0_2 = arith.constant 0 : index
    %1 = vector.load %arg2[%c0_1, %c0_2] : memref<128x1024xbf16, #tpu.memory_space<vmem>>, vector<128x1024xbf16>
    %cst = arith.constant dense<0.000000e+00> : vector<16x1024xf32>
    %2 = tpu.matmul %0, %1, %cst {dimension_numbers = #tpu.dot_dimension_numbers<[1], [0], [0], [1], [0, 0, 1, 1], [], []>} : vector<16x128xbf16>, vector<128x1024xbf16>, vector<16x1024xf32> -> vector<16x1024xf32>
    %c0_3 = arith.constant 0 : index
    %c0_4 = arith.constant 0 : index
    %3 = vector.load %arg3[%c0_3, %c0_4] : memref<16x1024xf32, #tpu.memory_space<vmem>>, vector<16x1024xf32>
    tpu.vector_store %arg3[%c0_3, %c0_4], %2 {strides = array<i32>} : memref<16x1024xf32, #tpu.memory_space<vmem>>, vector<16x1024xf32>,
    %cst_5 = arith.constant dense<0.000000e+00> : vector<16xf32>
    %4 = vector.multi_reduction <add>, %2, %cst_5 [1] : vector<16x1024xf32> to vector<16xf32>
    %5 = vector.shape_cast %4 : vector<16xf32> to vector<16x1xf32>
    %6 = vector.shape_cast %5 : vector<16x1xf32> to vector<1x16x1xf32>
    %c0_6 = arith.constant 0 : index
    %c0_7 = arith.constant 0 : index
    %c0_8 = arith.constant 0 : index
    %7 = vector.load %arg4[%c0_6, %c0_7, %c0_8] : memref<1x16x1xf32, #tpu.memory_space<vmem>>, vector<1x16x1xf32>
    tpu.vector_store %arg4[%c0_6, %c0_7, %c0_8], %6 {strides = array<i32>} : memref<1x16x1xf32, #tpu.memory_space<vmem>>, vector<1x16x1xf32>,
    %8 = arith.mulf %2, %2 : vector<16x1024xf32>
    %cst_9 = arith.constant dense<0.000000e+00> : vector<16xf32>
    %9 = vector.multi_reduction <add>, %8, %cst_9 [1] : vector<16x1024xf32> to vector<16xf32>
    %10 = vector.shape_cast %9 : vector<16xf32> to vector<16x1xf32>
    %11 = vector.shape_cast %10 : vector<16x1xf32> to vector<1x16x1xf32>
    %c0_10 = arith.constant 0 : index
    %c0_11 = arith.constant 0 : index
    %c0_12 = arith.constant 0 : index
    %12 = vector.load %arg5[%c0_10, %c0_11, %c0_12] : memref<1x16x1xf32, #tpu.memory_space<vmem>>, vector<1x16x1xf32>
    tpu.vector_store %arg5[%c0_10, %c0_11, %c0_12], %11 {strides = array<i32>} : memref<1x16x1xf32, #tpu.memory_space<vmem>>, vector<1x16x1xf32>,
    return
  }
  func.func @transform_0(%arg0: i32) -> (i32, i32) {
    %c0_i32 = arith.constant 0 : i32
    %c0_i32_0 = arith.constant 0 : i32
    %c0_i32_1 = arith.constant 0 : i32
    return %c0_i32, %c0_i32_0 : i32, i32
  }
  func.func @transform_1(%arg0: i32) -> (i32, i32) {
    %c0_i32 = arith.constant 0 : i32
    %c0_i32_0 = arith.constant 0 : i32
    return %c0_i32, %arg0 : i32, i32
  }
  func.func @transform_2(%arg0: i32) -> (i32, i32) {
    %c0_i32 = arith.constant 0 : i32
    %c0_i32_0 = arith.constant 0 : i32
    return %c0_i32, %arg0 : i32, i32
  }
  func.func @transform_3(%arg0: i32) -> (i32, i32, i32) {
    %c0_i32 = arith.constant 0 : i32
    %c0_i32_0 = arith.constant 0 : i32
    %c0_i32_1 = arith.constant 0 : i32
    return %arg0, %c0_i32, %c0_i32_0 : i32, i32, i32
  }
  func.func @transform_4(%arg0: i32) -> (i32, i32, i32) {
    %c0_i32 = arith.constant 0 : i32
    %c0_i32_0 = arith.constant 0 : i32
    %c0_i32_1 = arith.constant 0 : i32
    return %arg0, %c0_i32, %c0_i32_0 : i32, i32, i32
  }
}

</mosaic_0001>

<llo_original>
// kernel: single_conv_block.3
$region0: #{single_conv_block.3}
  #allocation0 [shape = 'u32[]', space=smem, size = 0x4, offset = 0x4, fixed_abs, tag = 'smem constant byte address 0x4 - core index']
  #allocation1 [shape = 'u32[144,128]{1,0:T(1,128)}', space=vmem, size = 0x12000, scoped, tag = 'internal scratch']
  %s0 = inlined_call_operand.vmem [shape: f32[16,1024], index: 0, kind: input, shape index: {}, may-alias: {0,3}]
  %s1 = inlined_call_operand.vmem [shape: f32[16,1], index: 1, kind: input, shape index: {}]
  %s2 = inlined_call_operand.vmem [shape: f32[16,1], index: 2, kind: input, shape index: {}]
  %s3 = inlined_call_operand.vmem [shape: f32[16,1024], index: 3, kind: output, shape index: {}, may-alias: {0,3}]
  %s4 = sld [smem:[#allocation0]]
  $region22: #{single_conv_block.3} parent=0
    _
  %s6 = ssub.s32 1, %s4
  %s7 = scalar_select 0, %s6, %s4
  // Predicated region
  $region2: #{single_conv_block.3} parent=0 // pred_check
    _
  $region3: #{single_conv_block.3} parent=0 // pred_check_branch
    %9 = sbr.rel (0) target = $region5
  $region4: #{single_conv_block.3} parent=0 // pred_region
    _
  $region5: #{single_conv_block.3} parent=0 // pred_fallthru
    _
  // Predicated region
  $region6: #{single_conv_block.3} parent=0 // pred_check
    _
  $region7: #{single_conv_block.3} parent=0 // pred_check_branch
    %11 = sbr.rel (0) target = $region9
  $region8: #{single_conv_block.3} parent=0 // pred_region
    _
  $region9: #{single_conv_block.3} parent=0 // pred_fallthru
    _
  // Predicated region
  $region10: #{single_conv_block.3} parent=0 // pred_check
    _
  $region11: #{single_conv_block.3} parent=0 // pred_check_branch
    %13 = sbr.rel (0) target = $region13
  $region12: #{single_conv_block.3} parent=0 // pred_region
    _
  $region13: #{single_conv_block.3} parent=0 // pred_fallthru
    _
  %v14 = vld [vmem:[%s0] sm:$0xff]
  %v15 = vld [vmem:[%s0 + $0x8] sm:$0xff]
  %v16 = vld [vmem:[%s0 + $0x10] sm:$0xff]
  %v17 = vld [vmem:[%s0 + $0x18] sm:$0xff]
  %v18 = vld [vmem:[%s0 + $0x20] sm:$0xff]
  %v19 = vld [vmem:[%s0 + $0x28] sm:$0xff]
  %v20 = vld [vmem:[%s0 + $0x30] sm:$0xff]
  %v21 = vld [vmem:[%s0 + $0x38] sm:$0xff]
  %v22 = vld [vmem:[%s0 + $0x40] sm:$0xff]
  %v23 = vld [vmem:[%s0 + $0x48] sm:$0xff]
  %v24 = vld [vmem:[%s0 + $0x50] sm:$0xff]
  %v25 = vld [vmem:[%s0 + $0x58] sm:$0xff]
  %v26 = vld [vmem:[%s0 + $0x60] sm:$0xff]
  %v27 = vld [vmem:[%s0 + $0x68] sm:$0xff]
  %v28 = vld [vmem:[%s0 + $0x70] sm:$0xff]
  %v29 = vld [vmem:[%s0 + $0x78] sm:$0xff]
  %v30 = vld [vmem:[%s1] sm:$0xff]
  %v31 = vld [vmem:[%s1 + $0x8] sm:$0xff]
  %33 = vset.pattern.permute.xlu0 0
  %34 = vperm.xlu0 %33, %v30
  %v35 = vpop.permute.xlu0 %34
  %38 = vset.pattern.permute.xlu0 0
  %39 = vperm.xlu0 %38, %v31
  %v40 = vpop.permute.xlu0 %39
  %v42 = vmul.f32 %v14, %v35
  %v43 = vmul.f32 %v15, %v35
  %v44 = vmul.f32 %v16, %v35
  %v45 = vmul.f32 %v17, %v35
  %v46 = vmul.f32 %v18, %v35
  %v47 = vmul.f32 %v19, %v35
  %v48 = vmul.f32 %v20, %v35
  %v49 = vmul.f32 %v21, %v35
  %v50 = vmul.f32 %v22, %v40
  %v51 = vmul.f32 %v23, %v40
  %v52 = vmul.f32 %v24, %v40
  %v53 = vmul.f32 %v25, %v40
  %v54 = vmul.f32 %v26, %v40
  %v55 = vmul.f32 %v27, %v40
  %v56 = vmul.f32 %v28, %v40
  %v57 = vmul.f32 %v29, %v40
  %v58 = vld [vmem:[%s2] sm:$0xff]
  %v59 = vld [vmem:[%s2 + $0x8] sm:$0xff]
  %61 = vset.pattern.permute.xlu0 0
  %62 = vperm.xlu0 %61, %v58
  %v63 = vpop.permute.xlu0 %62
  %66 = vset.pattern.permute.xlu0 0
  %67 = vperm.xlu0 %66, %v59
  %v68 = vpop.permute.xlu0 %67
  %v70 = vadd.f32 %v42, %v63
  %v71 = vadd.f32 %v43, %v63
  %v72 = vadd.f32 %v44, %v63
  %v73 = vadd.f32 %v45, %v63
  %v74 = vadd.f32 %v46, %v63
  %v75 = vadd.f32 %v47, %v63
  %v76 = vadd.f32 %v48, %v63
  %v77 = vadd.f32 %v49, %v63
  %v78 = vadd.f32 %v50, %v68
  %v79 = vadd.f32 %v51, %v68
  %v80 = vadd.f32 %v52, %v68
  %v81 = vadd.f32 %v53, %v68
  %v82 = vadd.f32 %v54, %v68
  %v83 = vadd.f32 %v55, %v68
  %v84 = vadd.f32 %v56, %v68
  %v85 = vadd.f32 %v57, %v68
  %v86 = vmax.f32 %v70, 0.0
  %v87 = vmax.f32 %v71, 0.0
  %v88 = vmax.f32 %v72, 0.0
  %v89 = vmax.f32 %v73, 0.0
  %v90 = vmax.f32 %v74, 0.0
  %v91 = vmax.f32 %v75, 0.0
  %v92 = vmax.f32 %v76, 0.0
  %v93 = vmax.f32 %v77, 0.0
  %v94 = vmax.f32 %v78, 0.0
  %v95 = vmax.f32 %v79, 0.0
  %v96 = vmax.f32 %v80, 0.0
  %v97 = vmax.f32 %v81, 0.0
  %v98 = vmax.f32 %v82, 0.0
  %v99 = vmax.f32 %v83, 0.0
  %v100 = vmax.f32 %v84, 0.0
  %v101 = vmax.f32 %v85, 0.0
  %102 = vst [vmem:[%s3] sm:$0xff] %v86
  %103 = vst [vmem:[%s3 + $0x8] sm:$0xff] %v87
  %104 = vst [vmem:[%s3 + $0x10] sm:$0xff] %v88
  %105 = vst [vmem:[%s3 + $0x18] sm:$0xff] %v89
  %106 = vst [vmem:[%s3 + $0x20] sm:$0xff] %v90
  %107 = vst [vmem:[%s3 + $0x28] sm:$0xff] %v91
  %108 = vst [vmem:[%s3 + $0x30] sm:$0xff] %v92
  %109 = vst [vmem:[%s3 + $0x38] sm:$0xff] %v93
  %110 = vst [vmem:[%s3 + $0x40] sm:$0xff] %v94
  %111 = vst [vmem:[%s3 + $0x48] sm:$0xff] %v95
  %112 = vst [vmem:[%s3 + $0x50] sm:$0xff] %v96
  %113 = vst [vmem:[%s3 + $0x58] sm:$0xff] %v97
  %114 = vst [vmem:[%s3 + $0x60] sm:$0xff] %v98
  %115 = vst [vmem:[%s3 + $0x68] sm:$0xff] %v99
  %116 = vst [vmem:[%s3 + $0x70] sm:$0xff] %v100
  %117 = vst [vmem:[%s3 + $0x78] sm:$0xff] %v101
  // Predicated region
  $region14: #{single_conv_block.3} parent=0 // pred_check
    _
  $region15: #{single_conv_block.3} parent=0 // pred_check_branch
    %119 = sbr.rel (0) target = $region17
  $region16: #{single_conv_block.3} parent=0 // pred_region
    _
  $region17: #{single_conv_block.3} parent=0 // pred_fallthru
    _
  // Predicated region
  $region18: #{single_conv_block.3} parent=0 // pred_check
    _
  $region19: #{single_conv_block.3} parent=0 // pred_check_branch
    %121 = sbr.rel (0) target = $region21
  $region20: #{single_conv_block.3} parent=0 // pred_region
    _
  $region21: #{single_conv_block.3} parent=0 // pred_fallthru
    _

// kernel: single_conv_block.2
$region0: #{single_conv_block.2}
  #allocation0 [shape = 'u32[]', space=smem, size = 0x4, offset = 0x4, fixed_abs, tag = 'smem constant byte address 0x4 - core index']
  #allocation1 [shape = 'u32[144,128]{1,0:T(1,128)}', space=vmem, size = 0x12000, scoped, tag = 'internal scratch']
  %s0 = inlined_call_operand.vmem [shape: bf16[16,128], index: 0, kind: input, shape index: {}]
  %s1 = inlined_call_operand.vmem [shape: bf16[128,1024], index: 1, kind: input, shape index: {}]
  %s2 = inlined_call_operand.vmem [shape: f32[16,1024], index: 2, kind: output, shape index: {0}]
  %s3 = inlined_call_operand.vmem [shape: f32[1,16,1], index: 3, kind: output, shape index: {1}]
  %s4 = inlined_call_operand.vmem [shape: f32[1,16,1], index: 4, kind: output, shape index: {2}]
  %5 = xla_tuple %s2, %s3, %s4
  %s6 = sld [smem:[#allocation0]]
  $region34: #{single_conv_block.2} parent=0
    _
  %s8 = ssub.s32 1, %s6
  %s9 = scalar_select 0, %s8, %s6
  // Predicated region
  $region2: #{single_conv_block.2} parent=0 // pred_check
    _
  $region3: #{single_conv_block.2} parent=0 // pred_check_branch
    %11 = sbr.rel (0) target = $region5
  $region4: #{single_conv_block.2} parent=0 // pred_region
    _
  $region5: #{single_conv_block.2} parent=0 // pred_fallthru
    _
  // Predicated region
  $region6: #{single_conv_block.2} parent=0 // pred_check
    _
  $region7: #{single_conv_block.2} parent=0 // pred_check_branch
    %13 = sbr.rel (0) target = $region9
  $region8: #{single_conv_block.2} parent=0 // pred_region
    _
  $region9: #{single_conv_block.2} parent=0 // pred_fallthru
    _
  %v15 = vld [vmem:[%s0] sm:$0xf]
  %v16 = vld [vmem:[%s0 + $0x4] sm:$0xf]
  %v17 = vld [vmem:[%s1] sm:$0xff]
  %v18 = vld [vmem:[%s1 + $0x8] sm:$0xff]
  %v19 = vld [vmem:[%s1 + $0x10] sm:$0xff]
  %v20 = vld [vmem:[%s1 + $0x18] sm:$0xff]
  %v21 = vld [vmem:[%s1 + $0x20] sm:$0xff]
  %v22 = vld [vmem:[%s1 + $0x28] sm:$0xff]
  %v23 = vld [vmem:[%s1 + $0x30] sm:$0xff]
  %v24 = vld [vmem:[%s1 + $0x38] sm:$0xff]
  %v25 = vld [vmem:[%s1 + $0x40] sm:$0xff]
  %v26 = vld [vmem:[%s1 + $0x48] sm:$0xff]
  %v27 = vld [vmem:[%s1 + $0x50] sm:$0xff]
  %v28 = vld [vmem:[%s1 + $0x58] sm:$0xff]
  %v29 = vld [vmem:[%s1 + $0x60] sm:$0xff]
  %v30 = vld [vmem:[%s1 + $0x68] sm:$0xff]
  %v31 = vld [vmem:[%s1 + $0x70] sm:$0xff]
  %v32 = vld [vmem:[%s1 + $0x78] sm:$0xff]
  %v33 = vld [vmem:[%s1 + $0x80] sm:$0xff]
  %v34 = vld [vmem:[%s1 + $0x88] sm:$0xff]
  %v35 = vld [vmem:[%s1 + $0x90] sm:$0xff]
  %v36 = vld [vmem:[%s1 + $0x98] sm:$0xff]
  %v37 = vld [vmem:[%s1 + $0xa0] sm:$0xff]
  %v38 = vld [vmem:[%s1 + $0xa8] sm:$0xff]
  %v39 = vld [vmem:[%s1 + $0xb0] sm:$0xff]
  %v40 = vld [vmem:[%s1 + $0xb8] sm:$0xff]
  %v41 = vld [vmem:[%s1 + $0xc0] sm:$0xff]
  %v42 = vld [vmem:[%s1 + $0xc8] sm:$0xff]
  %v43 = vld [vmem:[%s1 + $0xd0] sm:$0xff]
  %v44 = vld [vmem:[%s1 + $0xd8] sm:$0xff]
  %v45 = vld [vmem:[%s1 + $0xe0] sm:$0xff]
  %v46 = vld [vmem:[%s1 + $0xe8] sm:$0xff]
  %v47 = vld [vmem:[%s1 + $0xf0] sm:$0xff]
  %v48 = vld [vmem:[%s1 + $0xf8] sm:$0xff]
  %v49 = vld [vmem:[%s1 + $0x100] sm:$0xff]
  %v50 = vld [vmem:[%s1 + $0x108] sm:$0xff]
  %v51 = vld [vmem:[%s1 + $0x110] sm:$0xff]
  %v52 = vld [vmem:[%s1 + $0x118] sm:$0xff]
  %v53 = vld [vmem:[%s1 + $0x120] sm:$0xff]
  %v54 = vld [vmem:[%s1 + $0x128] sm:$0xff]
  %v55 = vld [vmem:[%s1 + $0x130] sm:$0xff]
  %v56 = vld [vmem:[%s1 + $0x138] sm:$0xff]
  %v57 = vld [vmem:[%s1 + $0x140] sm:$0xff]
  %v58 = vld [vmem:[%s1 + $0x148] sm:$0xff]
  %v59 = vld [vmem:[%s1 + $0x150] sm:$0xff]
  %v60 = vld [vmem:[%s1 + $0x158] sm:$0xff]
  %v61 = vld [vmem:[%s1 + $0x160] sm:$0xff]
  %v62 = vld [vmem:[%s1 + $0x168] sm:$0xff]
  %v63 = vld [vmem:[%s1 + $0x170] sm:$0xff]
  %v64 = vld [vmem:[%s1 + $0x178] sm:$0xff]
  %v65 = vld [vmem:[%s1 + $0x180] sm:$0xff]
  %v66 = vld [vmem:[%s1 + $0x188] sm:$0xff]
  %v67 = vld [vmem:[%s1 + $0x190] sm:$0xff]
  %v68 = vld [vmem:[%s1 + $0x198] sm:$0xff]
  %v69 = vld [vmem:[%s1 + $0x1a0] sm:$0xff]
  %v70 = vld [vmem:[%s1 + $0x1a8] sm:$0xff]
  %v71 = vld [vmem:[%s1 + $0x1b0] sm:$0xff]
  %v72 = vld [vmem:[%s1 + $0x1b8] sm:$0xff]
  %v73 = vld [vmem:[%s1 + $0x1c0] sm:$0xff]
  %v74 = vld [vmem:[%s1 + $0x1c8] sm:$0xff]
  %v75 = vld [vmem:[%s1 + $0x1d0] sm:$0xff]
  %v76 = vld [vmem:[%s1 + $0x1d8] sm:$0xff]
  %v77 = vld [vmem:[%s1 + $0x1e0] sm:$0xff]
  %v78 = vld [vmem:[%s1 + $0x1e8] sm:$0xff]
  %v79 = vld [vmem:[%s1 + $0x1f0] sm:$0xff]
  %v80 = vld [vmem:[%s1 + $0x1f8] sm:$0xff]
  %v83 = vunpack.c.l.b16 %v15
  %v84 = vunpack.c.l.b16 %v16
  %v85 = vpack.c.b16 %v84, %v83
  %v151 = vunpack.c.l.b16 %v17
  %v152 = vunpack.c.h.b16 %v17
  %v153 = vunpack.c.l.b16 %v18
  %v154 = vunpack.c.h.b16 %v18
  %v155 = vunpack.c.l.b16 %v19
  %v156 = vunpack.c.h.b16 %v19
  %v157 = vunpack.c.l.b16 %v20
  %v158 = vunpack.c.h.b16 %v20
  %v159 = vunpack.c.l.b16 %v21
  %v160 = vunpack.c.h.b16 %v21
  %v161 = vunpack.c.l.b16 %v22
  %v162 = vunpack.c.h.b16 %v22
  %v163 = vunpack.c.l.b16 %v23
  %v164 = vunpack.c.h.b16 %v23
  %v165 = vunpack.c.l.b16 %v24
  %v166 = vunpack.c.h.b16 %v24
  %v167 = vunpack.c.l.b16 %v25
  %v168 = vunpack.c.h.b16 %v25
  %v169 = vunpack.c.l.b16 %v26
  %v170 = vunpack.c.h.b16 %v26
  %v171 = vunpack.c.l.b16 %v27
  %v172 = vunpack.c.h.b16 %v27
  %v173 = vunpack.c.l.b16 %v28
  %v174 = vunpack.c.h.b16 %v28
  %v175 = vunpack.c.l.b16 %v29
  %v176 = vunpack.c.h.b16 %v29
  %v177 = vunpack.c.l.b16 %v30
  %v178 = vunpack.c.h.b16 %v30
  %v179 = vunpack.c.l.b16 %v31
  %v180 = vunpack.c.h.b16 %v31
  %v181 = vunpack.c.l.b16 %v32
  %v182 = vunpack.c.h.b16 %v32
  %v183 = vunpack.c.l.b16 %v33
  %v184 = vunpack.c.h.b16 %v33
  %v185 = vunpack.c.l.b16 %v34
  %v186 = vunpack.c.h.b16 %v34
  %v187 = vunpack.c.l.b16 %v35
  %v188 = vunpack.c.h.b16 %v35
  %v189 = vunpack.c.l.b16 %v36
  %v190 = vunpack.c.h.b16 %v36
  %v191 = vunpack.c.l.b16 %v37
  %v192 = vunpack.c.h.b16 %v37
  %v193 = vunpack.c.l.b16 %v38
  %v194 = vunpack.c.h.b16 %v38
  %v195 = vunpack.c.l.b16 %v39
  %v196 = vunpack.c.h.b16 %v39
  %v197 = vunpack.c.l.b16 %v40
  %v198 = vunpack.c.h.b16 %v40
  %v199 = vunpack.c.l.b16 %v41
  %v200 = vunpack.c.h.b16 %v41
  %v201 = vunpack.c.l.b16 %v42
  %v202 = vunpack.c.h.b16 %v42
  %v203 = vunpack.c.l.b16 %v43
  %v204 = vunpack.c.h.b16 %v43
  %v205 = vunpack.c.l.b16 %v44
  %v206 = vunpack.c.h.b16 %v44
  %v207 = vunpack.c.l.b16 %v45
  %v208 = vunpack.c.h.b16 %v45
  %v209 = vunpack.c.l.b16 %v46
  %v210 = vunpack.c.h.b16 %v46
  %v211 = vunpack.c.l.b16 %v47
  %v212 = vunpack.c.h.b16 %v47
  %v213 = vunpack.c.l.b16 %v48
  %v214 = vunpack.c.h.b16 %v48
  %v215 = vunpack.c.l.b16 %v49
  %v216 = vunpack.c.h.b16 %v49
  %v217 = vunpack.c.l.b16 %v50
  %v218 = vunpack.c.h.b16 %v50
  %v219 = vunpack.c.l.b16 %v51
  %v220 = vunpack.c.h.b16 %v51
  %v221 = vunpack.c.l.b16 %v52
  %v222 = vunpack.c.h.b16 %v52
  %v223 = vunpack.c.l.b16 %v53
  %v224 = vunpack.c.h.b16 %v53
  %v225 = vunpack.c.l.b16 %v54
  %v226 = vunpack.c.h.b16 %v54
  %v227 = vunpack.c.l.b16 %v55
  %v228 = vunpack.c.h.b16 %v55
  %v229 = vunpack.c.l.b16 %v56
  %v230 = vunpack.c.h.b16 %v56
  %v231 = vunpack.c.l.b16 %v57
  %v232 = vunpack.c.h.b16 %v57
  %v233 = vunpack.c.l.b16 %v58
  %v234 = vunpack.c.h.b16 %v58
  %v235 = vunpack.c.l.b16 %v59
  %v236 = vunpack.c.h.b16 %v59
  %v237 = vunpack.c.l.b16 %v60
  %v238 = vunpack.c.h.b16 %v60
  %v239 = vunpack.c.l.b16 %v61
  %v240 = vunpack.c.h.b16 %v61
  %v241 = vunpack.c.l.b16 %v62
  %v242 = vunpack.c.h.b16 %v62
  %v243 = vunpack.c.l.b16 %v63
  %v244 = vunpack.c.h.b16 %v63
  %v245 = vunpack.c.l.b16 %v64
  %v246 = vunpack.c.h.b16 %v64
  %v247 = vunpack.c.l.b16 %v65
  %v248 = vunpack.c.h.b16 %v65
  %v249 = vunpack.c.l.b16 %v66
  %v250 = vunpack.c.h.b16 %v66
  %v251 = vunpack.c.l.b16 %v67
  %v252 = vunpack.c.h.b16 %v67
  %v253 = vunpack.c.l.b16 %v68
  %v254 = vunpack.c.h.b16 %v68
  %v255 = vunpack.c.l.b16 %v69
  %v256 = vunpack.c.h.b16 %v69
  %v257 = vunpack.c.l.b16 %v70
  %v258 = vunpack.c.h.b16 %v70
  %v259 = vunpack.c.l.b16 %v71
  %v260 = vunpack.c.h.b16 %v71
  %v261 = vunpack.c.l.b16 %v72
  %v262 = vunpack.c.h.b16 %v72
  %v263 = vunpack.c.l.b16 %v73
  %v264 = vunpack.c.h.b16 %v73
  %v265 = vunpack.c.l.b16 %v74
  %v266 = vunpack.c.h.b16 %v74
  %v267 = vunpack.c.l.b16 %v75
  %v268 = vunpack.c.h.b16 %v75
  %v269 = vunpack.c.l.b16 %v76
  %v270 = vunpack.c.h.b16 %v76
  %v271 = vunpack.c.l.b16 %v77
  %v272 = vunpack.c.h.b16 %v77
  %v273 = vunpack.c.l.b16 %v78
  %v274 = vunpack.c.h.b16 %v78
  %v275 = vunpack.c.l.b16 %v79
  %v276 = vunpack.c.h.b16 %v79
  %v277 = vunpack.c.l.b16 %v80
  %v278 = vunpack.c.h.b16 %v80
  %v279 = vpack.c.b16 %v159, %v151
  %v280 = vpack.c.b16 %v160, %v152
  %v281 = vpack.c.b16 %v161, %v153
  %v282 = vpack.c.b16 %v162, %v154
  %v283 = vpack.c.b16 %v163, %v155
  %v284 = vpack.c.b16 %v164, %v156
  %v285 = vpack.c.b16 %v165, %v157
  %v286 = vpack.c.b16 %v166, %v158
  %v287 = vpack.c.b16 %v175, %v167
  %v288 = vpack.c.b16 %v176, %v168
  %v289 = vpack.c.b16 %v177, %v169
  %v290 = vpack.c.b16 %v178, %v170
  %v291 = vpack.c.b16 %v179, %v171
  %v292 = vpack.c.b16 %v180, %v172
  %v293 = vpack.c.b16 %v181, %v173
  %v294 = vpack.c.b16 %v182, %v174
  %v295 = vpack.c.b16 %v191, %v183
  %v296 = vpack.c.b16 %v192, %v184
  %v297 = vpack.c.b16 %v193, %v185
  %v298 = vpack.c.b16 %v194, %v186
  %v299 = vpack.c.b16 %v195, %v187
  %v300 = vpack.c.b16 %v196, %v188
  %v301 = vpack.c.b16 %v197, %v189
  %v302 = vpack.c.b16 %v198, %v190
  %v303 = vpack.c.b16 %v207, %v199
  %v304 = vpack.c.b16 %v208, %v200
  %v305 = vpack.c.b16 %v209, %v201
  %v306 = vpack.c.b16 %v210, %v202
  %v307 = vpack.c.b16 %v211, %v203
  %v308 = vpack.c.b16 %v212, %v204
  %v309 = vpack.c.b16 %v213, %v205
  %v310 = vpack.c.b16 %v214, %v206
  %v311 = vpack.c.b16 %v223, %v215
  %v312 = vpack.c.b16 %v224, %v216
  %v313 = vpack.c.b16 %v225, %v217
  %v314 = vpack.c.b16 %v226, %v218
  %v315 = vpack.c.b16 %v227, %v219
  %v316 = vpack.c.b16 %v228, %v220
  %v317 = vpack.c.b16 %v229, %v221
  %v318 = vpack.c.b16 %v230, %v222
  %v319 = vpack.c.b16 %v239, %v231
  %v320 = vpack.c.b16 %v240, %v232
  %v321 = vpack.c.b16 %v241, %v233
  %v322 = vpack.c.b16 %v242, %v234
  %v323 = vpack.c.b16 %v243, %v235
  %v324 = vpack.c.b16 %v244, %v236
  %v325 = vpack.c.b16 %v245, %v237
  %v326 = vpack.c.b16 %v246, %v238
  %v327 = vpack.c.b16 %v255, %v247
  %v328 = vpack.c.b16 %v256, %v248
  %v329 = vpack.c.b16 %v257, %v249
  %v330 = vpack.c.b16 %v258, %v250
  %v331 = vpack.c.b16 %v259, %v251
  %v332 = vpack.c.b16 %v260, %v252
  %v333 = vpack.c.b16 %v261, %v253
  %v334 = vpack.c.b16 %v262, %v254
  %v335 = vpack.c.b16 %v271, %v263
  %v336 = vpack.c.b16 %v272, %v264
  %v337 = vpack.c.b16 %v273, %v265
  %v338 = vpack.c.b16 %v274, %v266
  %v339 = vpack.c.b16 %v275, %v267
  %v340 = vpack.c.b16 %v276, %v268
  %v341 = vpack.c.b16 %v277, %v269
  %v342 = vpack.c.b16 %v278, %v270
  %407 = vmatprep.subr.bf16.mxu0 %v280
  %408 = vmatpush1.bf16.msra.mxu0 %v279
  %409 = vmatprep.subr.bf16.mxu0 %v288
  %410 = vmatpush1.bf16.msra.mxu0 %v287
  %411 = vmatprep.subr.bf16.mxu0 %v296
  %412 = vmatpush1.bf16.msra.mxu0 %v295
  %413 = vmatprep.subr.bf16.mxu0 %v304
  %414 = vmatpush1.bf16.msra.mxu0 %v303
  %415 = vmatprep.subr.bf16.mxu0 %v312
  %416 = vmatpush1.bf16.msra.mxu0 %v311
  %417 = vmatprep.subr.bf16.mxu0 %v320
  %418 = vmatpush1.bf16.msra.mxu0 %v319
  %419 = vmatprep.subr.bf16.mxu0 %v328
  %420 = vmatpush1.bf16.msra.mxu0 %v327
  %421 = vmatprep.subr.bf16.mxu0 %v336
  %422 = vmatpush1.bf16.msra.mxu0 %v335
  %423 = vmatprep.subr.bf16.mxu0 0
  %424 = vmatpush1.bf16.msra.mxu0 0
  %425 = vmatprep.subr.bf16.mxu0 0
  %426 = vmatpush1.bf16.msra.mxu0 0
  %427 = vmatprep.subr.bf16.mxu0 0
  %428 = vmatpush1.bf16.msra.mxu0 0
  %429 = vmatprep.subr.bf16.mxu0 0
  %430 = vmatpush1.bf16.msra.mxu0 0
  %431 = vmatprep.subr.bf16.mxu0 0
  %432 = vmatpush1.bf16.msra.mxu0 0
  %433 = vmatprep.subr.bf16.mxu0 0
  %434 = vmatpush1.bf16.msra.mxu0 0
  %435 = vmatprep.subr.bf16.mxu0 0
  %436 = vmatpush1.bf16.msra.mxu0 0
  %437 = vmatprep.subr.bf16.mxu0 0
  %438 = vmatpush1.bf16.msra.mxu0 0
  %439 = vmatprep.mubr.bf16.mxu0 0
  %440 = vmatmul.mubr.bf16.gmra.mrb[0].mxu0 %v85
  %v441 = vpop.f32.mrb[0].mxu0
  %v442 = vadd.f32 0.0, %v441
  %v443 = vpop.f32.mrb[0].mxu0
  %v444 = vadd.f32 0.0, %v443
  %v445 = vpop.f32.mrb[0].mxu0
  %v446 = vadd.f32 0.0, %v445
  %v447 = vpop.f32.mrb[0].mxu0
  %v448 = vadd.f32 0.0, %v447
  %449 = vdwg.mxu0
  %450 = vmatprep.subr.bf16.mxu0 %v282
  %451 = vmatpush1.bf16.msra.mxu0 %v281
  %452 = vmatprep.subr.bf16.mxu0 %v290
  %453 = vmatpush1.bf16.msra.mxu0 %v289
  %454 = vmatprep.subr.bf16.mxu0 %v298
  %455 = vmatpush1.bf16.msra.mxu0 %v297
  %456 = vmatprep.subr.bf16.mxu0 %v306
  %457 = vmatpush1.bf16.msra.mxu0 %v305
  %458 = vmatprep.subr.bf16.mxu0 %v314
  %459 = vmatpush1.bf16.msra.mxu0 %v313
  %460 = vmatprep.subr.bf16.mxu0 %v322
  %461 = vmatpush1.bf16.msra.mxu0 %v321
  %462 = vmatprep.subr.bf16.mxu0 %v330
  %463 = vmatpush1.bf16.msra.mxu0 %v329
  %464 = vmatprep.subr.bf16.mxu0 %v338
  %465 = vmatpush1.bf16.msra.mxu0 %v337
  %466 = vmatprep.subr.bf16.mxu0 0
  %467 = vmatpush1.bf16.msra.mxu0 0
  %468 = vmatprep.subr.bf16.mxu0 0
  %469 = vmatpush1.bf16.msra.mxu0 0
  %470 = vmatprep.subr.bf16.mxu0 0
  %471 = vmatpush1.bf16.msra.mxu0 0
  %472 = vmatprep.subr.bf16.mxu0 0
  %473 = vmatpush1.bf16.msra.mxu0 0
  %474 = vmatprep.subr.bf16.mxu0 0
  %475 = vmatpush1.bf16.msra.mxu0 0
  %476 = vmatprep.subr.bf16.mxu0 0
  %477 = vmatpush1.bf16.msra.mxu0 0
  %478 = vmatprep.subr.bf16.mxu0 0
  %479 = vmatpush1.bf16.msra.mxu0 0
  %480 = vmatprep.subr.bf16.mxu0 0
  %481 = vmatpush1.bf16.msra.mxu0 0
  %482 = vmatprep.mubr.bf16.mxu0 0
  %483 = vmatmul.mubr.bf16.gmra.mrb[0].mxu0 %v85
  %v484 = vpop.f32.mrb[0].mxu0
  %v485 = vadd.f32 0.0, %v484
  %v486 = vpop.f32.mrb[0].mxu0
  %v487 = vadd.f32 0.0, %v486
  %v488 = vpop.f32.mrb[0].mxu0
  %v489 = vadd.f32 0.0, %v488
  %v490 = vpop.f32.mrb[0].mxu0
  %v491 = vadd.f32 0.0, %v490
  %492 = vdwg.mxu0
  %493 = vmatprep.subr.bf16.mxu0 %v284
  %494 = vmatpush1.bf16.msra.mxu0 %v283
  %495 = vmatprep.subr.bf16.mxu0 %v292
  %496 = vmatpush1.bf16.msra.mxu0 %v291
  %497 = vmatprep.subr.bf16.mxu0 %v300
  %498 = vmatpush1.bf16.msra.mxu0 %v299
  %499 = vmatprep.subr.bf16.mxu0 %v308
  %500 = vmatpush1.bf16.msra.mxu0 %v307
  %501 = vmatprep.subr.bf16.mxu0 %v316
  %502 = vmatpush1.bf16.msra.mxu0 %v315
  %503 = vmatprep.subr.bf16.mxu0 %v324
  %504 = vmatpush1.bf16.msra.mxu0 %v323
  %505 = vmatprep.subr.bf16.mxu0 %v332
  %506 = vmatpush1.bf16.msra.mxu0 %v331
  %507 = vmatprep.subr.bf16.mxu0 %v340
  %508 = vmatpush1.bf16.msra.mxu0 %v339
  %509 = vmatprep.subr.bf16.mxu0 0
  %510 = vmatpush1.bf16.msra.mxu0 0
  %511 = vmatprep.subr.bf16.mxu0 0
  %512 = vmatpush1.bf16.msra.mxu0 0
  %513 = vmatprep.subr.bf16.mxu0 0
  %514 = vmatpush1.bf16.msra.mxu0 0
  %515 = vmatprep.subr.bf16.mxu0 0
  %516 = vmatpush1.bf16.msra.mxu0 0
  %517 = vmatprep.subr.bf16.mxu0 0
  %518 = vmatpush1.bf16.msra.mxu0 0
  %519 = vmatprep.subr.bf16.mxu0 0
  %520 = vmatpush1.bf16.msra.mxu0 0
  %521 = vmatprep.subr.bf16.mxu0 0
  %522 = vmatpush1.bf16.msra.mxu0 0
  %523 = vmatprep.subr.bf16.mxu0 0
  %524 = vmatpush1.bf16.msra.mxu0 0
  %525 = vmatprep.mubr.bf16.mxu0 0
  %526 = vmatmul.mubr.bf16.gmra.mrb[0].mxu0 %v85
  %v527 = vpop.f32.mrb[0].mxu0
  %v528 = vadd.f32 0.0, %v527
  %v529 = vpop.f32.mrb[0].mxu0
  %v530 = vadd.f32 0.0, %v529
  %v531 = vpop.f32.mrb[0].mxu0
  %v532 = vadd.f32 0.0, %v531
  %v533 = vpop.f32.mrb[0].mxu0
  %v534 = vadd.f32 0.0, %v533
  %535 = vdwg.mxu0
  %536 = vmatprep.subr.bf16.mxu0 %v286
  %537 = vmatpush1.bf16.msra.mxu0 %v285
  %538 = vmatprep.subr.bf16.mxu0 %v294
  %539 = vmatpush1.bf16.msra.mxu0 %v293
  %540 = vmatprep.subr.bf16.mxu0 %v302
  %541 = vmatpush1.bf16.msra.mxu0 %v301
  %542 = vmatprep.subr.bf16.mxu0 %v310
  %543 = vmatpush1.bf16.msra.mxu0 %v309
  %544 = vmatprep.subr.bf16.mxu0 %v318
  %545 = vmatpush1.bf16.msra.mxu0 %v317
  %546 = vmatprep.subr.bf16.mxu0 %v326
  %547 = vmatpush1.bf16.msra.mxu0 %v325
  %548 = vmatprep.subr.bf16.mxu0 %v334
  %549 = vmatpush1.bf16.msra.mxu0 %v333
  %550 = vmatprep.subr.bf16.mxu0 %v342
  %551 = vmatpush1.bf16.msra.mxu0 %v341
  %552 = vmatprep.subr.bf16.mxu0 0
  %553 = vmatpush1.bf16.msra.mxu0 0
  %554 = vmatprep.subr.bf16.mxu0 0
  %555 = vmatpush1.bf16.msra.mxu0 0
  %556 = vmatprep.subr.bf16.mxu0 0
  %557 = vmatpush1.bf16.msra.mxu0 0
  %558 = vmatprep.subr.bf16.mxu0 0
  %559 = vmatpush1.bf16.msra.mxu0 0
  %560 = vmatprep.subr.bf16.mxu0 0
  %561 = vmatpush1.bf16.msra.mxu0 0
  %562 = vmatprep.subr.bf16.mxu0 0
  %563 = vmatpush1.bf16.msra.mxu0 0
  %564 = vmatprep.subr.bf16.mxu0 0
  %565 = vmatpush1.bf16.msra.mxu0 0
  %566 = vmatprep.subr.bf16.mxu0 0
  %567 = vmatpush1.bf16.msra.mxu0 0
  %568 = vmatprep.mubr.bf16.mxu0 0
  %569 = vmatmul.mubr.bf16.gmra.mrb[0].mxu0 %v85
  %v570 = vpop.f32.mrb[0].mxu0
  %v571 = vadd.f32 0.0, %v570
  %v572 = vpop.f32.mrb[0].mxu0
  %v573 = vadd.f32 0.0, %v572
  %v574 = vpop.f32.mrb[0].mxu0
  %v575 = vadd.f32 0.0, %v574
  %v576 = vpop.f32.mrb[0].mxu0
  %v577 = vadd.f32 0.0, %v576
  %578 = vdwg.mxu0
  %579 = vst [vmem:[%s2] sm:$0xff] %v442
  %580 = vst [vmem:[%s2 + $0x8] sm:$0xff] %v444
  %581 = vst [vmem:[%s2 + $0x10] sm:$0xff] %v485
  %582 = vst [vmem:[%s2 + $0x18] sm:$0xff] %v487
  %583 = vst [vmem:[%s2 + $0x20] sm:$0xff] %v528
  %584 = vst [vmem:[%s2 + $0x28] sm:$0xff] %v530
  %585 = vst [vmem:[%s2 + $0x30] sm:$0xff] %v571
  %586 = vst [vmem:[%s2 + $0x38] sm:$0xff] %v573
  %587 = vst [vmem:[%s2 + $0x40] sm:$0xff] %v446
  %588 = vst [vmem:[%s2 + $0x48] sm:$0xff] %v448
  %589 = vst [vmem:[%s2 + $0x50] sm:$0xff] %v489
  %590 = vst [vmem:[%s2 + $0x58] sm:$0xff] %v491
  %591 = vst [vmem:[%s2 + $0x60] sm:$0xff] %v532
  %592 = vst [vmem:[%s2 + $0x68] sm:$0xff] %v534
  %593 = vst [vmem:[%s2 + $0x70] sm:$0xff] %v575
  %594 = vst [vmem:[%s2 + $0x78] sm:$0xff] %v577
  %v595 = vadd.f32 %v442, %v444
  %v596 = vadd.f32 %v595, %v485
  %v597 = vadd.f32 %v596, %v487
  %v598 = vadd.f32 %v597, %v528
  %v599 = vadd.f32 %v598, %v530
  %v600 = vadd.f32 %v599, %v571
  %v601 = vadd.f32 %v600, %v573
  %602 = vadd.xlane.f32.xlu0 %v601
  %v603 = vpop.xlane.xlu0 %602
  %v604 = vadd.f32 %v446, %v448
  %v605 = vadd.f32 %v604, %v489
  %v606 = vadd.f32 %v605, %v491
  %v607 = vadd.f32 %v606, %v532
  %v608 = vadd.f32 %v607, %v534
  %v609 = vadd.f32 %v608, %v575
  %v610 = vadd.f32 %v609, %v577
  %611 = vadd.xlane.f32.xlu0 %v610
  %v612 = vpop.xlane.xlu0 %611
  %vm613 = vcmask 7168
  %614 = vst.msk [vmem:[%s3] sm:$0xff] %vm613, %v603
  %615 = vst.msk [vmem:[%s3 + $0x8] sm:$0xff] %vm613, %v612
  %v616 = vmul.f32 %v442, %v442
  %v617 = vmul.f32 %v444, %v444
  %v618 = vmul.f32 %v485, %v485
  %v619 = vmul.f32 %v487, %v487
  %v620 = vmul.f32 %v528, %v528
  %v621 = vmul.f32 %v530, %v530
  %v622 = vmul.f32 %v571, %v571
  %v623 = vmul.f32 %v573, %v573
  %v624 = vmul.f32 %v446, %v446
  %v625 = vmul.f32 %v448, %v448
  %v626 = vmul.f32 %v489, %v489
  %v627 = vmul.f32 %v491, %v491
  %v628 = vmul.f32 %v532, %v532
  %v629 = vmul.f32 %v534, %v534
  %v630 = vmul.f32 %v575, %v575
  %v631 = vmul.f32 %v577, %v577
  %v632 = vadd.f32 %v616, %v617
  %v633 = vadd.f32 %v632, %v618
  %v634 = vadd.f32 %v633, %v619
  %v635 = vadd.f32 %v634, %v620
  %v636 = vadd.f32 %v635, %v621
  %v637 = vadd.f32 %v636, %v622
  %v638 = vadd.f32 %v637, %v623
  %639 = vadd.xlane.f32.xlu0 %v638
  %v640 = vpop.xlane.xlu0 %639
  %v641 = vadd.f32 %v624, %v625
  %v642 = vadd.f32 %v641, %v626
  %v643 = vadd.f32 %v642, %v627
  %v644 = vadd.f32 %v643, %v628
  %v645 = vadd.f32 %v644, %v629
  %v646 = vadd.f32 %v645, %v630
  %v647 = vadd.f32 %v646, %v631
  %648 = vadd.xlane.f32.xlu0 %v647
  %v649 = vpop.xlane.xlu0 %648
  %650 = vst.msk [vmem:[%s4] sm:$0xff] %vm613, %v640
  %651 = vst.msk [vmem:[%s4 + $0x8] sm:$0xff] %vm613, %v649
  // Predicated region
  $region10: #{single_conv_block.2} parent=0 // pred_check
    _
  $region11: #{single_conv_block.2} parent=0 // pred_check_branch
    %653 = sbr.rel (0) target = $region13
  $region12: #{single_conv_block.2} parent=0 // pred_region
    _
  $region13: #{single_conv_block.2} parent=0 // pred_fallthru
    _
  // Predicated region
  $region14: #{single_conv_block.2} parent=0 // pred_check
    _
  $region15: #{single_conv_block.2} parent=0 // pred_check_branch
    %655 = sbr.rel (0) target = $region17
  $region16: #{single_conv_block.2} parent=0 // pred_region
    _
  $region17: #{single_conv_block.2} parent=0 // pred_fallthru
    _
  // Predicated region
  $region18: #{single_conv_block.2} parent=0 // pred_check
    _
  $region19: #{single_conv_block.2} parent=0 // pred_check_branch
    %657 = sbr.rel (0) target = $region21
  $region20: #{single_conv_block.2} parent=0 // pred_region
    _
  $region21: #{single_conv_block.2} parent=0 // pred_fallthru
    _
  // Predicated region
  $region22: #{single_conv_block.2} parent=0 // pred_check
    _
  $region23: #{single_conv_block.2} parent=0 // pred_check_branch
    %659 = sbr.rel (0) target = $region25
  $region24: #{single_conv_block.2} parent=0 // pred_region
    _
  $region25: #{single_conv_block.2} parent=0 // pred_fallthru
    _
  // Predicated region
  $region26: #{single_conv_block.2} parent=0 // pred_check
    _
  $region27: #{single_conv_block.2} parent=0 // pred_check_branch
    %661 = sbr.rel (0) target = $region29
  $region28: #{single_conv_block.2} parent=0 // pred_region
    _
  $region29: #{single_conv_block.2} parent=0 // pred_fallthru
    _
  // Predicated region
  $region30: #{single_conv_block.2} parent=0 // pred_check
    _
  $region31: #{single_conv_block.2} parent=0 // pred_check_branch
    %663 = sbr.rel (0) target = $region33
  $region32: #{single_conv_block.2} parent=0 // pred_region
    _
  $region33: #{single_conv_block.2} parent=0 // pred_fallthru
    _

</llo_original>
